<compile_context>
chip_gen: v7x
topology: tpu7x:2x2x1
jax: 0.10.0
libtpu: 0.0.40
codegen_flags: <defaults>
</compile_context>

<pallas_src>
import numpy as np
import jax
import jax.numpy as jnp
from jax import lax
from jax.experimental import pallas as pl
from jax.experimental.pallas import tpu as pltpu

EPS = 1e-5       # PyTorch BatchNorm default eps
LANES = 128


def _round_up(x, m):
    return ((x + m - 1) // m) * m


# --------------------------------------------------------------------------- #
# Kernel
# --------------------------------------------------------------------------- #
def make_quest_cnn_kernel(seq, seq_pad, tile_b, emb_dim, max_fh, pad,
                          t_pad, k_pad, vocab_pad):
    bs = tile_b * seq_pad

    def kernel(tok_ref, emb_ref, wk_ref, bias_ref, mask_ref,
               w1_ref, b1_ref, w2_ref, b2_ref, out_ref):
        # ---- vectorized embedding gather: one-hot(tokens) @ emb on the MXU ----
        tok = tok_ref[...]                                          # (tile_b, seq_pad, 1) i32
        iota = lax.broadcasted_iota(jnp.int32, (tile_b, seq_pad, vocab_pad), 2)
        onehot = jnp.where(tok == iota, 1.0, 0.0)                   # f32, lane-broadcast
        onehot2 = onehot.reshape(bs, vocab_pad).astype(jnp.bfloat16)
        g2 = jnp.dot(onehot2, emb_ref[...],
                     preferred_element_type=jnp.float32)            # (bs, E) f32
        g3 = g2.reshape(tile_b, seq_pad, emb_dim)[:, :seq, :]       # (tile_b, seq, E)

        # ---- conv LHS with taps fused into K: (tile_b*t_pad, k_pad) ----------
        taps = []
        for dh in range(max_fh):
            lead = pad - dh
            trail = t_pad - lead - seq
            pieces = []
            if lead:
                pieces.append(jnp.zeros((tile_b, lead, emb_dim), jnp.float32))
            pieces.append(g3)
            if trail:
                pieces.append(jnp.zeros((tile_b, trail, emb_dim), jnp.float32))
            taps.append(jnp.concatenate(pieces, axis=1))            # (tile_b, t_pad, E)
        kk = max_fh * emb_dim
        if kk < k_pad:
            taps.append(jnp.zeros((tile_b, t_pad, k_pad - kk), jnp.float32))
        l3 = jnp.concatenate(taps, axis=2)                          # (tile_b, t_pad, k_pad)
        lhs = l3.reshape(tile_b * t_pad, k_pad).astype(jnp.bfloat16)

        # ---- all conv filters fused along N: one matmul + f32 epilogue -------
        acc = jnp.dot(lhs, wk_ref[...], preferred_element_type=jnp.float32)
        acc = acc.reshape(tile_b, t_pad, -1)                        # (tile_b, t_pad, n_pad)
        # folded (conv bias + BN2d) -> ReLU -> zero invalid time rows -> max-pool
        conv = jnp.maximum(acc + bias_ref[...], 0.0) * mask_ref[...]
        feat = jnp.max(conv, axis=1)                                # (tile_b, n_pad) f32

        # ---- Linear1 + ReLU, then (BN1d folded into) Linear2 -----------------
        h = jnp.maximum(
            jnp.dot(feat.astype(jnp.bfloat16), w1_ref[...],
                    preferred_element_type=jnp.float32) + b1_ref[...], 0.0)
        out_ref[...] = (jnp.dot(h.astype(jnp.bfloat16), w2_ref[...],
                                preferred_element_type=jnp.float32)
                        + b2_ref[...])
    return kernel


# --------------------------------------------------------------------------- #
# Wrapper-side constant folding / packing (trace-time, done once)
# --------------------------------------------------------------------------- #
def fold_params(params, filter_heights, seq_len, emb_dim, out_ch,
                intermediate, num_classes, vocab):
    f32, bf16 = jnp.float32, jnp.bfloat16
    n_f = len(filter_heights)
    max_fh = max(filter_heights)
    pad = max_fh - 1
    t_real = seq_len + pad                        # longest conv output length
    t_pad = _round_up(t_real, 8)                  # sublane-aligned matmul M (per batch)
    seq_pad = _round_up(seq_len, 8)
    vocab_pad = _round_up(vocab, 16)
    k_real = max_fh * emb_dim
    k_pad = _round_up(max(k_real, LANES), LANES)  # tap-fused K, lane-dense
    n_real = n_f * out_ch
    n_pad = _round_up(max(n_real, LANES), LANES)
    i_pad = _round_up(max(intermediate, LANES), LANES)
    c_pad = _round_up(max(num_classes, LANES), LANES)

    # Embedding table (bf16 for the MXU one-hot gather).
    emb_p = jnp.zeros((vocab_pad, emb_dim), f32).at[:vocab].set(
        params["embedding"].astype(f32)).astype(bf16)

    # Fold conv bias + BN2d into tap weights packed along K=(tap,E), N=(filter,out_ch).
    w_taps = np.zeros((max_fh, emb_dim, n_pad), np.float32)
    bias_all = np.zeros((n_pad,), np.float32)
    for i, fh in enumerate(filter_heights):
        scale = np.asarray(params["conv_bn_g"][i]) / np.sqrt(
            np.asarray(params["conv_bn_v"][i]) + EPS)
        w = np.asarray(params["conv_w"][i])[:, 0] * scale[:, None, None]   # (O, fh, E)
        b = scale * (np.asarray(params["conv_b"][i])
                     - np.asarray(params["conv_bn_m"][i])) \
            + np.asarray(params["conv_bn_b"][i])
        off = pad - (fh - 1)
        for dh in range(fh):
            w_taps[off + dh, :, i * out_ch:(i + 1) * out_ch] = w[:, dh, :].T
        bias_all[i * out_ch:(i + 1) * out_ch] = b
    wk = np.zeros((k_pad, n_pad), np.float32)
    wk[:k_real] = w_taps.reshape(k_real, n_pad)

    # Static per-filter valid-time mask (conv output length is seq + fh - 1).
    # Relies on ReLU >= 0 so masked (zero) rows never win the max-pool.
    mask_np = np.zeros((t_pad, n_pad), np.float32)
    for i, fh in enumerate(filter_heights):
        mask_np[: seq_len + fh - 1, i * out_ch:(i + 1) * out_ch] = 1.0

    # Linear1 (lane-padded).
    w1p = jnp.zeros((n_pad, i_pad), f32).at[:n_real, :intermediate].set(
        params["lin1_w"].T).astype(bf16)
    b1p = jnp.zeros((1, i_pad), f32).at[0, :intermediate].set(params["lin1_b"])

    # Fold BN1d (eval) into Linear2.
    s1 = params["bn1_g"] * lax.rsqrt(params["bn1_v"] + EPS)
    w2f = params["lin2_w"].T * s1[:, None]                          # (I, C)
    b2f = (params["bn1_b"] - params["bn1_m"] * s1) @ params["lin2_w"].T \
          + params["lin2_b"]
    w2p = jnp.zeros((i_pad, c_pad), f32).at[:intermediate, :num_classes].set(
        w2f).astype(bf16)
    b2p = jnp.zeros((1, c_pad), f32).at[0, :num_classes].set(b2f)

    return dict(
        emb=emb_p, wk=jnp.asarray(wk).astype(bf16),
        bias=jnp.asarray(bias_all[None, :]), mask=jnp.asarray(mask_np),
        w1=w1p, b1=b1p, w2=w2p, b2=b2p,
        dims=dict(seq_len=seq_len, seq_pad=seq_pad, emb_dim=emb_dim,
                  max_fh=max_fh, pad=pad, t_pad=t_pad, k_pad=k_pad,
                  c_pad=c_pad, vocab=vocab, vocab_pad=vocab_pad,
                  num_classes=num_classes))


def quest_cnn_forward(packed, tokens):
    d = packed["dims"]
    seq, B = tokens.shape
    assert seq == d["seq_len"]

    # Batch-major, clipped (guard against out-of-range ids), padded token ids,
    # with a trailing unit lane dim so the kernel can lane-broadcast them.
    tok_bm = jnp.clip(tokens.astype(jnp.int32).T, 0, d["vocab"] - 1)   # (B, seq)
    tile_b = B if B <= 8 else 8
    b_pad = _round_up(B, tile_b)
    tok_p = jnp.zeros((b_pad, d["seq_pad"], 1), jnp.int32)
    tok_p = tok_p.at[:B, :seq, 0].set(tok_bm)
    grid = (b_pad // tile_b,)

    kernel = make_quest_cnn_kernel(seq, d["seq_pad"], tile_b, d["emb_dim"],
                                   d["max_fh"], d["pad"], d["t_pad"],
                                   d["k_pad"], d["vocab_pad"])

    def resident(arr):   # whole array, VMEM-resident across all grid steps
        return pl.BlockSpec(arr.shape, lambda i: (0, 0))

    out_pad = pl.pallas_call(
        kernel,
        out_shape=jax.ShapeDtypeStruct((b_pad, d["c_pad"]), jnp.float32),
        grid=grid,
        in_specs=[
            pl.BlockSpec((tile_b, d["seq_pad"], 1), lambda i: (i, 0, 0)),  # tokens
            resident(packed["emb"]), resident(packed["wk"]),
            resident(packed["bias"]), resident(packed["mask"]),
            resident(packed["w1"]), resident(packed["b1"]),
            resident(packed["w2"]), resident(packed["b2"]),
        ],
        out_specs=pl.BlockSpec((tile_b, d["c_pad"]), lambda i: (i, 0)),
        compiler_params=pltpu.CompilerParams(
            dimension_semantics=("parallel",),          # v7x: shard batch over 2 TCs
            vmem_limit_bytes=32 * 1024 * 1024),         # v5e default is only 16 MiB
    )(tok_p, packed["emb"], packed["wk"], packed["bias"], packed["mask"],
      packed["w1"], packed["b1"], packed["w2"], packed["b2"])
    return out_pad[:B, :d["num_classes"]]


# --------------------------------------------------------------------------- #
# Pure-JAX reference (mirrors the PyTorch forward, eval mode, f32)
# --------------------------------------------------------------------------- #
def quest_cnn_reference(params, tokens, filter_heights):
    embedded = params["embedding"][tokens]
    embedded = jnp.transpose(embedded, (1, 0, 2))[:, None, :, :]   # (B,1,S,E)
    pooled = []
    for i, fh in enumerate(filter_heights):
        w = params["conv_w"][i]                                    # (O,1,fh,E)
        conv = lax.conv_general_dilated(
            embedded, w, window_strides=(1, 1),
            padding=((fh - 1, fh - 1), (0, 0)),
            dimension_numbers=("NCHW", "OIHW", "NCHW"))
        conv = conv + params["conv_b"][i][None, :, None, None]
        scale = params["conv_bn_g"][i] / jnp.sqrt(params["conv_bn_v"][i] + EPS)
        conv = (conv - params["conv_bn_m"][i][None, :, None, None]) \
               * scale[None, :, None, None] \
               + params["conv_bn_b"][i][None, :, None, None]
        conv = jax.nn.relu(conv)[..., 0]                           # (B,O,T)
        pooled.append(jnp.max(conv, axis=2))
    feat = jnp.concatenate(pooled, axis=1)
    h = jax.nn.relu(feat @ params["lin1_w"].T + params["lin1_b"])
    scale1 = params["bn1_g"] / jnp.sqrt(params["bn1_v"] + EPS)
    h = (h - params["bn1_m"]) * scale1 + params["bn1_b"]
    return h @ params["lin2_w"].T + params["lin2_b"]


def init_params(key, vocab, emb, out_ch, filter_heights, intermediate, num_classes):
    n_f = len(filter_heights)
    linear_size = out_ch * n_f
    keys = iter(jax.random.split(key, 64))
    nxt = lambda: next(keys)
    f32 = jnp.float32
    p = {}
    p["embedding"] = 0.1 * jax.random.normal(nxt(), (vocab, emb), f32)
    p["conv_w"] = [0.1 * jax.random.normal(nxt(), (out_ch, 1, fh, emb), f32)
                   for fh in filter_heights]
    p["conv_b"] = [0.1 * jax.random.normal(nxt(), (out_ch,), f32) for _ in range(n_f)]
    p["conv_bn_g"] = [1.0 + 0.1 * jax.random.normal(nxt(), (out_ch,), f32) for _ in range(n_f)]
    p["conv_bn_b"] = [0.1 * jax.random.normal(nxt(), (out_ch,), f32) for _ in range(n_f)]
    p["conv_bn_m"] = [0.05 * jax.random.normal(nxt(), (out_ch,), f32) for _ in range(n_f)]
    p["conv_bn_v"] = [jax.random.uniform(nxt(), (out_ch,), f32, 0.5, 1.5) for _ in range(n_f)]
    p["lin1_w"] = 0.1 * jax.random.normal(nxt(), (intermediate, linear_size), f32)
    p["lin1_b"] = 0.1 * jax.random.normal(nxt(), (intermediate,), f32)
    p["bn1_g"] = 1.0 + 0.1 * jax.random.normal(nxt(), (intermediate,), f32)
    p["bn1_b"] = 0.1 * jax.random.normal(nxt(), (intermediate,), f32)
    p["bn1_m"] = 0.05 * jax.random.normal(nxt(), (intermediate,), f32)
    p["bn1_v"] = jax.random.uniform(nxt(), (intermediate,), f32, 0.5, 1.5)
    p["lin2_w"] = 0.1 * jax.random.normal(nxt(), (num_classes, intermediate), f32)
    p["lin2_b"] = 0.1 * jax.random.normal(nxt(), (num_classes,), f32)
    return p


if __name__ == "__main__":
    # Small, module-consistent shapes.
    vocab, emb = 50, 32          # embedding table (vocab, E)
    seq_len, batch = 8, 2        # input[0] is (seq, batch) of token ids
    out_ch = 8                   # args.feature_maps
    filter_heights = (2, 3)      # args.filter_sizes
    intermediate = 16            # args.intermidiate
    num_classes = 4

    key = jax.random.PRNGKey(0)
    k_par, k_tok = jax.random.split(key)
    params = init_params(k_par, vocab, emb, out_ch, filter_heights,
                         intermediate, num_classes)
    tokens = jax.random.randint(k_tok, (seq_len, batch), 0, vocab, dtype=jnp.int32)

    packed = fold_params(params, filter_heights, seq_len, emb, out_ch,
                         intermediate, num_classes, vocab)
    out = quest_cnn_forward(packed, tokens)
    out = jax.block_until_ready(out)

    # Reference is pure f32; kernel feeds the MXU bf16 (f32 accumulation),
    # so compare with a bf16-appropriate tolerance.
    ref = quest_cnn_reference(params, tokens, filter_heights)
    np.testing.assert_allclose(np.asarray(out), np.asarray(ref),
                               rtol=2e-2, atol=2e-2)

    # TODO(synk): dropout / embedding-dropout are training-only (identity in eval).
    print("KERNEL_OK")
</pallas_src>

<mosaic_0001>
module attributes {stable_mosaic.version = 11 : i64} {
  func.func @kernel(%arg0: i32, %arg1: memref<2x8x1xi32, #tpu.memory_space<vmem>>, %arg2: memref<64x32xbf16, #tpu.memory_space<vmem>>, %arg3: memref<128x128xbf16, #tpu.memory_space<vmem>>, %arg4: memref<1x128xf32, #tpu.memory_space<vmem>>, %arg5: memref<16x128xf32, #tpu.memory_space<vmem>>, %arg6: memref<128x128xbf16, #tpu.memory_space<vmem>>, %arg7: memref<1x128xf32, #tpu.memory_space<vmem>>, %arg8: memref<128x128xbf16, #tpu.memory_space<vmem>>, %arg9: memref<1x128xf32, #tpu.memory_space<vmem>>, %arg10: memref<2x128xf32, #tpu.memory_space<vmem>>) attributes {dimension_semantics = [#tpu.dimension_semantics<parallel>], iteration_bounds = array<i64: 1>, scalar_prefetch = 0 : i64, scratch_operands = 0 : i64, tpu.core_type = #tpu.core_type<tc>, window_params = [{transform_indices = @transform_0, window_bounds = array<i64: 2, 8, 1>}, {pipeline_mode = #tpu.pipeline_mode<synchronous>, transform_indices = @transform_1, window_bounds = array<i64: 64, 32>}, {pipeline_mode = #tpu.pipeline_mode<synchronous>, transform_indices = @transform_2, window_bounds = array<i64: 128, 128>}, {pipeline_mode = #tpu.pipeline_mode<synchronous>, transform_indices = @transform_3, window_bounds = array<i64: 1, 128>}, {pipeline_mode = #tpu.pipeline_mode<synchronous>, transform_indices = @transform_4, window_bounds = array<i64: 16, 128>}, {pipeline_mode = #tpu.pipeline_mode<synchronous>, transform_indices = @transform_5, window_bounds = array<i64: 128, 128>}, {pipeline_mode = #tpu.pipeline_mode<synchronous>, transform_indices = @transform_6, window_bounds = array<i64: 1, 128>}, {pipeline_mode = #tpu.pipeline_mode<synchronous>, transform_indices = @transform_7, window_bounds = array<i64: 128, 128>}, {pipeline_mode = #tpu.pipeline_mode<synchronous>, transform_indices = @transform_8, window_bounds = array<i64: 1, 128>}, {transform_indices = @transform_9, window_bounds = array<i64: 2, 128>}]} {
    %c0 = arith.constant 0 : index
    %c0_0 = arith.constant 0 : index
    %c0_1 = arith.constant 0 : index
    %0 = vector.load %arg1[%c0, %c0_0, %c0_1] : memref<2x8x1xi32, #tpu.memory_space<vmem>>, vector<2x8x1xi32>
    %1 = tpu.iota {dimensions = array<i32: 2>} : vector<2x8x64xi32>
    %2 = vector.broadcast %0 : vector<2x8x1xi32> to vector<2x8x64xi32>
    %3 = arith.cmpi eq, %2, %1 : vector<2x8x64xi32>
    %cst = arith.constant 1.000000e+00 : f32
    %cst_2 = arith.constant 0.000000e+00 : f32
    %4 = vector.broadcast %cst : f32 to vector<2x8x64xf32>
    %5 = vector.broadcast %cst_2 : f32 to vector<2x8x64xf32>
    %6 = arith.select %3, %4, %5 : vector<2x8x64xi1>, vector<2x8x64xf32>
    %7 = vector.shape_cast %6 : vector<2x8x64xf32> to vector<16x64xf32>
    %8 = arith.truncf %7 : vector<16x64xf32> to vector<16x64xbf16>
    %c0_3 = arith.constant 0 : index
    %c0_4 = arith.constant 0 : index
    %9 = vector.load %arg2[%c0_3, %c0_4] : memref<64x32xbf16, #tpu.memory_space<vmem>>, vector<64x32xbf16>
    %cst_5 = arith.constant dense<0.000000e+00> : vector<16x32xf32>
    %10 = tpu.matmul %8, %9, %cst_5 {dimension_numbers = #tpu.dot_dimension_numbers<[1], [0], [0], [1], [0, 0, 1, 1], [], []>} : vector<16x64xbf16>, vector<64x32xbf16>, vector<16x32xf32> -> vector<16x32xf32>
    %11 = vector.shape_cast %10 : vector<16x32xf32> to vector<2x8x32xf32>
    %cst_6 = arith.constant 0.000000e+00 : f32
    %12 = vector.broadcast %cst_6 : f32 to vector<2x2x32xf32>
    %cst_7 = arith.constant 0.000000e+00 : f32
    %13 = vector.broadcast %cst_7 : f32 to vector<2x6x32xf32>
    %14 = tpu.concatenate %12, %11, %13 in 1 : vector<2x2x32xf32>, vector<2x8x32xf32>, vector<2x6x32xf32> -> vector<2x16x32xf32>
    %cst_8 = arith.constant 0.000000e+00 : f32
    %15 = vector.broadcast %cst_8 : f32 to vector<2x1x32xf32>
    %cst_9 = arith.constant 0.000000e+00 : f32
    %16 = vector.broadcast %cst_9 : f32 to vector<2x7x32xf32>
    %17 = tpu.concatenate %15, %11, %16 in 1 : vector<2x1x32xf32>, vector<2x8x32xf32>, vector<2x7x32xf32> -> vector<2x16x32xf32>
    %cst_10 = arith.constant 0.000000e+00 : f32
    %18 = vector.broadcast %cst_10 : f32 to vector<2x8x32xf32>
    %19 = tpu.concatenate %11, %18 in 1 : vector<2x8x32xf32>, vector<2x8x32xf32> -> vector<2x16x32xf32>
    %cst_11 = arith.constant 0.000000e+00 : f32
    %20 = vector.broadcast %cst_11 : f32 to vector<2x16x32xf32>
    %21 = tpu.concatenate %14, %17, %19, %20 in 2 : vector<2x16x32xf32>, vector<2x16x32xf32>, vector<2x16x32xf32>, vector<2x16x32xf32> -> vector<2x16x128xf32>
    %22 = vector.shape_cast %21 : vector<2x16x128xf32> to vector<32x128xf32>
    %23 = arith.truncf %22 : vector<32x128xf32> to vector<32x128xbf16>
    %c0_12 = arith.constant 0 : index
    %c0_13 = arith.constant 0 : index
    %24 = vector.load %arg3[%c0_12, %c0_13] : memref<128x128xbf16, #tpu.memory_space<vmem>>, vector<128x128xbf16>
    %cst_14 = arith.constant dense<0.000000e+00> : vector<32x128xf32>
    %25 = tpu.matmul %23, %24, %cst_14 {dimension_numbers = #tpu.dot_dimension_numbers<[1], [0], [0], [1], [0, 0, 1, 1], [], []>} : vector<32x128xbf16>, vector<128x128xbf16>, vector<32x128xf32> -> vector<32x128xf32>
    %26 = vector.shape_cast %25 : vector<32x128xf32> to vector<2x16x128xf32>
    %c0_15 = arith.constant 0 : index
    %c0_16 = arith.constant 0 : index
    %27 = vector.load %arg4[%c0_15, %c0_16] : memref<1x128xf32, #tpu.memory_space<vmem>>, vector<1x128xf32>
    %28 = vector.shape_cast %27 : vector<1x128xf32> to vector<1x1x128xf32>
    %29 = vector.broadcast %28 : vector<1x1x128xf32> to vector<2x16x128xf32>
    %30 = arith.addf %26, %29 : vector<2x16x128xf32>
    %cst_17 = arith.constant 0.000000e+00 : f32
    %31 = vector.broadcast %cst_17 : f32 to vector<2x16x128xf32>
    %32 = arith.maximumf %30, %31 : vector<2x16x128xf32>
    %c0_18 = arith.constant 0 : index
    %c0_19 = arith.constant 0 : index
    %33 = vector.load %arg5[%c0_18, %c0_19] : memref<16x128xf32, #tpu.memory_space<vmem>>, vector<16x128xf32>
    %34 = vector.shape_cast %33 : vector<16x128xf32> to vector<1x16x128xf32>
    %35 = vector.broadcast %34 : vector<1x16x128xf32> to vector<2x16x128xf32>
    %36 = arith.mulf %32, %35 : vector<2x16x128xf32>
    %cst_20 = arith.constant dense<0xFF800000> : vector<2x128xf32>
    %37 = vector.multi_reduction <maximumf>, %36, %cst_20 [1] : vector<2x16x128xf32> to vector<2x128xf32>
    %38 = arith.truncf %37 : vector<2x128xf32> to vector<2x128xbf16>
    %c0_21 = arith.constant 0 : index
    %c0_22 = arith.constant 0 : index
    %39 = vector.load %arg6[%c0_21, %c0_22] : memref<128x128xbf16, #tpu.memory_space<vmem>>, vector<128x128xbf16>
    %cst_23 = arith.constant dense<0.000000e+00> : vector<2x128xf32>
    %40 = tpu.matmul %38, %39, %cst_23 {dimension_numbers = #tpu.dot_dimension_numbers<[1], [0], [0], [1], [0, 0, 1, 1], [], []>} : vector<2x128xbf16>, vector<128x128xbf16>, vector<2x128xf32> -> vector<2x128xf32>
    %c0_24 = arith.constant 0 : index
    %c0_25 = arith.constant 0 : index
    %41 = vector.load %arg7[%c0_24, %c0_25] : memref<1x128xf32, #tpu.memory_space<vmem>>, vector<1x128xf32>
    %42 = vector.broadcast %41 : vector<1x128xf32> to vector<2x128xf32>
    %43 = arith.addf %40, %42 : vector<2x128xf32>
    %cst_26 = arith.constant 0.000000e+00 : f32
    %44 = vector.broadcast %cst_26 : f32 to vector<2x128xf32>
    %45 = arith.maximumf %43, %44 : vector<2x128xf32>
    %46 = arith.truncf %45 : vector<2x128xf32> to vector<2x128xbf16>
    %c0_27 = arith.constant 0 : index
    %c0_28 = arith.constant 0 : index
    %47 = vector.load %arg8[%c0_27, %c0_28] : memref<128x128xbf16, #tpu.memory_space<vmem>>, vector<128x128xbf16>
    %cst_29 = arith.constant dense<0.000000e+00> : vector<2x128xf32>
    %48 = tpu.matmul %46, %47, %cst_29 {dimension_numbers = #tpu.dot_dimension_numbers<[1], [0], [0], [1], [0, 0, 1, 1], [], []>} : vector<2x128xbf16>, vector<128x128xbf16>, vector<2x128xf32> -> vector<2x128xf32>
    %c0_30 = arith.constant 0 : index
    %c0_31 = arith.constant 0 : index
    %49 = vector.load %arg9[%c0_30, %c0_31] : memref<1x128xf32, #tpu.memory_space<vmem>>, vector<1x128xf32>
    %50 = vector.broadcast %49 : vector<1x128xf32> to vector<2x128xf32>
    %51 = arith.addf %48, %50 : vector<2x128xf32>
    %c0_32 = arith.constant 0 : index
    %c0_33 = arith.constant 0 : index
    %52 = vector.load %arg10[%c0_32, %c0_33] : memref<2x128xf32, #tpu.memory_space<vmem>>, vector<2x128xf32>
    tpu.vector_store %arg10[%c0_32, %c0_33], %51 {strides = array<i32>} : memref<2x128xf32, #tpu.memory_space<vmem>>, vector<2x128xf32>,
    return
  }
  func.func @transform_0(%arg0: i32) -> (i32, i32, i32) {
    %c0_i32 = arith.constant 0 : i32
    %c0_i32_0 = arith.constant 0 : i32
    %c0_i32_1 = arith.constant 0 : i32
    return %arg0, %c0_i32, %c0_i32_0 : i32, i32, i32
  }
  func.func @transform_1(%arg0: i32) -> (i32, i32) {
    %c0_i32 = arith.constant 0 : i32
    %c0_i32_0 = arith.constant 0 : i32
    %c0_i32_1 = arith.constant 0 : i32
    return %c0_i32, %c0_i32_0 : i32, i32
  }
  func.func @transform_2(%arg0: i32) -> (i32, i32) {
    %c0_i32 = arith.constant 0 : i32
    %c0_i32_0 = arith.constant 0 : i32
    %c0_i32_1 = arith.constant 0 : i32
    return %c0_i32, %c0_i32_0 : i32, i32
  }
  func.func @transform_3(%arg0: i32) -> (i32, i32) {
    %c0_i32 = arith.constant 0 : i32
    %c0_i32_0 = arith.constant 0 : i32
    %c0_i32_1 = arith.constant 0 : i32
    return %c0_i32, %c0_i32_0 : i32, i32
  }
  func.func @transform_4(%arg0: i32) -> (i32, i32) {
    %c0_i32 = arith.constant 0 : i32
    %c0_i32_0 = arith.constant 0 : i32
    %c0_i32_1 = arith.constant 0 : i32
    return %c0_i32, %c0_i32_0 : i32, i32
  }
  func.func @transform_5(%arg0: i32) -> (i32, i32) {
    %c0_i32 = arith.constant 0 : i32
    %c0_i32_0 = arith.constant 0 : i32
    %c0_i32_1 = arith.constant 0 : i32
    return %c0_i32, %c0_i32_0 : i32, i32
  }
  func.func @transform_6(%arg0: i32) -> (i32, i32) {
    %c0_i32 = arith.constant 0 : i32
    %c0_i32_0 = arith.constant 0 : i32
    %c0_i32_1 = arith.constant 0 : i32
    return %c0_i32, %c0_i32_0 : i32, i32
  }
  func.func @transform_7(%arg0: i32) -> (i32, i32) {
    %c0_i32 = arith.constant 0 : i32
    %c0_i32_0 = arith.constant 0 : i32
    %c0_i32_1 = arith.constant 0 : i32
    return %c0_i32, %c0_i32_0 : i32, i32
  }
  func.func @transform_8(%arg0: i32) -> (i32, i32) {
    %c0_i32 = arith.constant 0 : i32
    %c0_i32_0 = arith.constant 0 : i32
    %c0_i32_1 = arith.constant 0 : i32
    return %c0_i32, %c0_i32_0 : i32, i32
  }
  func.func @transform_9(%arg0: i32) -> (i32, i32) {
    %c0_i32 = arith.constant 0 : i32
    %c0_i32_0 = arith.constant 0 : i32
    return %arg0, %c0_i32 : i32, i32
  }
}

</mosaic_0001>

<llo_original>
// kernel: tpu_custom_call.1
$region0: #{tpu_custom_call.1}
  #allocation0 [shape = 'u32[]', space=smem, size = 0x4, offset = 0x4, fixed_abs, tag = 'smem constant byte address 0x4 - core index']
  #allocation1 [shape = 'u32[144,128]{1,0:T(1,128)}', space=vmem, size = 0x12000, scoped, tag = 'internal scratch']
  %s0 = inlined_call_operand.vmem [shape: s32[2,8,1], index: 0, kind: input, shape index: {}]
  %s1 = inlined_call_operand.vmem [shape: bf16[64,32], index: 1, kind: input, shape index: {}]
  %s2 = inlined_call_operand.vmem [shape: bf16[128,128], index: 2, kind: input, shape index: {}]
  %s3 = inlined_call_operand.vmem [shape: f32[1,128], index: 3, kind: input, shape index: {}]
  %s4 = inlined_call_operand.vmem [shape: f32[16,128], index: 4, kind: input, shape index: {}]
  %s5 = inlined_call_operand.hbm [shape: bf16[128,128], index: 5, kind: input, shape index: {}]
  %s6 = inlined_call_operand.vmem [shape: f32[1,128], index: 6, kind: input, shape index: {}]
  %s7 = inlined_call_operand.hbm [shape: bf16[128,128], index: 7, kind: input, shape index: {}]
  %s8 = inlined_call_operand.vmem [shape: f32[1,128], index: 8, kind: input, shape index: {}]
  %s9 = inlined_call_operand.hbm [shape: f32[2,128], index: 9, kind: output, shape index: {}]
  %s10 = sld [smem:[#allocation0]]
  $region54: #{tpu_custom_call.1} parent=0
    _
  %s12 = ssub.s32 1, %s10
  %s13 = scalar_select 0, %s12, %s10
  $region1: #{tpu_custom_call.1} parent=0
    #allocation2 [shape = 'u8[32768]{0}', space=vmem, size = 0x8000, scoped, tag = 'input window, operand 5, single buffered']
    #allocation3 [shape = 's32[1]{0}', space=sflag, size = 0x4, scoped, tag = 'scoped memory for tpu_custom_call.1']
    #allocation4 [shape = 's32[1]{0}', space=sflag, size = 0x4, scoped, tag = 'scoped memory for tpu_custom_call.1']
    #allocation5 [shape = 'u8[32768]{0}', space=vmem, size = 0x8000, scoped, tag = 'input window, operand 7, single buffered']
    #allocation6 [shape = 's32[1]{0}', space=sflag, size = 0x4, scoped, tag = 'scoped memory for tpu_custom_call.1']
    #allocation7 [shape = 'u8[1024]{0}', space=vmem, size = 0x400, scoped, tag = 'output window, operand 0, single buffered']
    %14 = vsyncpa [#allocation3], 0
    %15 = vsyncpa [#allocation6], 0
    %16 = vsyncpa [#allocation4], 0
    // Predicated region
    $region2: #{tpu_custom_call.1} parent=1 // pred_check
      _
    $region3: #{tpu_custom_call.1} parent=1 // pred_check_branch
      %18 = sbr.rel (0) target = $region5
    $region4: #{tpu_custom_call.1} parent=1 // pred_region
      _
    $region5: #{tpu_custom_call.1} parent=1 // pred_fallthru
      _
    // Predicated region
    $region6: #{tpu_custom_call.1} parent=1 // pred_check
      _
    $region7: #{tpu_custom_call.1} parent=1 // pred_check_branch
      %20 = sbr.rel (0) target = $region9
    $region8: #{tpu_custom_call.1} parent=1 // pred_region
      _
    $region9: #{tpu_custom_call.1} parent=1 // pred_fallthru
      _
    // Predicated region
    $region10: #{tpu_custom_call.1} parent=1 // pred_check
      _
    $region11: #{tpu_custom_call.1} parent=1 // pred_check_branch
      %22 = sbr.rel (0) target = $region13
    $region12: #{tpu_custom_call.1} parent=1 // pred_region
      _
    $region13: #{tpu_custom_call.1} parent=1 // pred_fallthru
      _
    // Predicated region
    $region14: #{tpu_custom_call.1} parent=1 // pred_check
      _
    $region15: #{tpu_custom_call.1} parent=1 // pred_check_branch
      %24 = sbr.rel (0) target = $region17
    $region16: #{tpu_custom_call.1} parent=1 // pred_region
      _
    $region17: #{tpu_custom_call.1} parent=1 // pred_fallthru
      _
    // Predicated region
    $region18: #{tpu_custom_call.1} parent=1 // pred_check
      _
    $region19: #{tpu_custom_call.1} parent=1 // pred_check_branch
      %26 = sbr.rel (0) target = $region21
    $region20: #{tpu_custom_call.1} parent=1 // pred_region
      _
    $region21: #{tpu_custom_call.1} parent=1 // pred_fallthru
      _
    // Predicated region
    $region22: #{tpu_custom_call.1} parent=1 // pred_check
      _
    $region23: #{tpu_custom_call.1} parent=1 // pred_check_branch
      %28 = sbr.rel (0) target = $region25
    $region24: #{tpu_custom_call.1} parent=1 // pred_region
      %s30 = ssub.s32 1024, 1024
      %31 = vsyncadd [#allocation3], %s30
      %s32 = sshll.u32 [#allocation2], 4
      %s33 = int_to_ptr.vmem [resolvable:$true] %s32
      %38 = dma.hbm_to_vmem [thread:$0]  %s5, 1024, %s33, [#allocation3], 64, 64, 4
    $region25: #{tpu_custom_call.1} parent=1 // pred_fallthru
      _
    // Predicated region
    $region26: #{tpu_custom_call.1} parent=1 // pred_check
      _
    $region27: #{tpu_custom_call.1} parent=1 // pred_check_branch
      %40 = sbr.rel (0) target = $region29
    $region28: #{tpu_custom_call.1} parent=1 // pred_region
      _
    $region29: #{tpu_custom_call.1} parent=1 // pred_fallthru
      _
    // Predicated region
    $region30: #{tpu_custom_call.1} parent=1 // pred_check
      _
    $region31: #{tpu_custom_call.1} parent=1 // pred_check_branch
      %42 = sbr.rel (0) target = $region33
    $region32: #{tpu_custom_call.1} parent=1 // pred_region
      %s44 = ssub.s32 1024, 1024
      %45 = vsyncadd [#allocation6], %s44
      %s46 = sshll.u32 [#allocation5], 4
      %s47 = int_to_ptr.vmem [resolvable:$true] %s46
      %52 = dma.hbm_to_vmem [thread:$0]  %s7, 1024, %s47, [#allocation6], 64, 64, 4
    $region33: #{tpu_custom_call.1} parent=1 // pred_fallthru
      _
    // Predicated region
    $region34: #{tpu_custom_call.1} parent=1 // pred_check
      _
    $region35: #{tpu_custom_call.1} parent=1 // pred_check_branch
      %54 = sbr.rel (0) target = $region37
    $region36: #{tpu_custom_call.1} parent=1 // pred_region
      _
    $region37: #{tpu_custom_call.1} parent=1 // pred_fallthru
      _
    // Predicated region
    $region38: #{tpu_custom_call.1} parent=1 // pred_check
      _
    $region39: #{tpu_custom_call.1} parent=1 // pred_check_branch
      %56 = sbr.rel (0) target = $region41
    $region40: #{tpu_custom_call.1} parent=1 // pred_region
      %57 = dma.done [#allocation3], 1024
    $region41: #{tpu_custom_call.1} parent=1 // pred_fallthru
      _
    // Predicated region
    $region42: #{tpu_custom_call.1} parent=1 // pred_check
      _
    $region43: #{tpu_custom_call.1} parent=1 // pred_check_branch
      %59 = sbr.rel (0) target = $region45
    $region44: #{tpu_custom_call.1} parent=1 // pred_region
      %60 = dma.done [#allocation6], 1024
    $region45: #{tpu_custom_call.1} parent=1 // pred_fallthru
      _
    %v62 = vld [vmem:[%s0] sm:$0xff]
    %v63 = vld [vmem:[%s0 + $0x8] sm:$0xff]
    %v64 = vlaneseq
    %v65 = vand.u32 %v64, 127
    %66 = vset.pattern.permute.xlu0 0
    %67 = vperm.xlu0 %66, %v62
    %v68 = vpop.permute.xlu0 %67
    %69 = vset.pattern.permute.xlu0 0
    %70 = vperm.xlu0 %69, %v63
    %v71 = vpop.permute.xlu0 %70
    %vm72 = vcmp.eq.s32.totalorder %v68, %v65
    %vm73 = vcmp.eq.s32.totalorder %v71, %v65
    %v74 = vsel %vm72, 1.0, 0.0
    %v75 = vsel %vm73, 1.0, 0.0
    %v76 = vpack.c.bf16 %v75, %v74
    %v77 = vld [vmem:[%s1] sm:$0xf]
    %v78 = vld [vmem:[%s1 + $0x4] sm:$0xf]
    %v79 = vld [vmem:[%s1 + $0x8] sm:$0xf]
    %v80 = vld [vmem:[%s1 + $0xc] sm:$0xf]
    %v81 = vld [vmem:[%s1 + $0x10] sm:$0xf]
    %v82 = vld [vmem:[%s1 + $0x14] sm:$0xf]
    %v83 = vld [vmem:[%s1 + $0x18] sm:$0xf]
    %v84 = vld [vmem:[%s1 + $0x1c] sm:$0xf]
    %v93 = vunpack.c.l.b16 %v77
    %v94 = vunpack.c.l.b16 %v78
    %v95 = vunpack.c.l.b16 %v79
    %v96 = vunpack.c.l.b16 %v80
    %v97 = vunpack.c.l.b16 %v81
    %v98 = vunpack.c.l.b16 %v82
    %v99 = vunpack.c.l.b16 %v83
    %v100 = vunpack.c.l.b16 %v84
    %v101 = vpack.c.b16 %v94, %v93
    %v102 = vpack.c.b16 %v96, %v95
    %v103 = vpack.c.b16 %v98, %v97
    %v104 = vpack.c.b16 %v100, %v99
    %vm109 = vcmask 523264
    %v111 = vsel %vm109, %v76, 0
    %113 = vmatprep.subr.bf16.mxu0 0
    %114 = vmatpush1.bf16.msra.mxu0 %v101
    %115 = vmatprep.subr.bf16.mxu0 0
    %116 = vmatpush1.bf16.msra.mxu0 %v102
    %117 = vmatprep.subr.bf16.mxu0 0
    %118 = vmatpush1.bf16.msra.mxu0 %v103
    %119 = vmatprep.subr.bf16.mxu0 0
    %120 = vmatpush1.bf16.msra.mxu0 %v104
    %121 = vmatprep.subr.bf16.mxu0 0
    %122 = vmatpush1.bf16.msra.mxu0 0
    %123 = vmatprep.subr.bf16.mxu0 0
    %124 = vmatpush1.bf16.msra.mxu0 0
    %125 = vmatprep.subr.bf16.mxu0 0
    %126 = vmatpush1.bf16.msra.mxu0 0
    %127 = vmatprep.subr.bf16.mxu0 0
    %128 = vmatpush1.bf16.msra.mxu0 0
    %129 = vmatprep.subr.bf16.mxu0 0
    %130 = vmatpush1.bf16.msra.mxu0 0
    %131 = vmatprep.subr.bf16.mxu0 0
    %132 = vmatpush1.bf16.msra.mxu0 0
    %133 = vmatprep.subr.bf16.mxu0 0
    %134 = vmatpush1.bf16.msra.mxu0 0
    %135 = vmatprep.subr.bf16.mxu0 0
    %136 = vmatpush1.bf16.msra.mxu0 0
    %137 = vmatprep.subr.bf16.mxu0 0
    %138 = vmatpush1.bf16.msra.mxu0 0
    %139 = vmatprep.subr.bf16.mxu0 0
    %140 = vmatpush1.bf16.msra.mxu0 0
    %141 = vmatprep.subr.bf16.mxu0 0
    %142 = vmatpush1.bf16.msra.mxu0 0
    %143 = vmatprep.subr.bf16.mxu0 0
    %144 = vmatpush1.bf16.msra.mxu0 0
    %145 = vmatprep.mubr.bf16.mxu0 0
    %146 = vmatmul.mubr.bf16.gmra.mrb[0].mxu0 %v111
    %v147 = vpop.f32.mrb[0].mxu0
    %v148 = vadd.f32 0.0, %v147
    %v149 = vpop.f32.mrb[0].mxu0
    %v150 = vpop.f32.mrb[0].mxu0
    %v151 = vadd.f32 0.0, %v150
    %v152 = vpop.f32.mrb[0].mxu0
    %153 = vdwg.mxu0
    %v156 = vrot.slane %v148, 6
    %v157 = vrot.slane %v151, 6
    %vm160 = vcmask 1041408
    %v161 = vsel %vm160, 0.0, %v156
    %v162 = vsel %vm160, 0.0, %v157
    %v163 = vsel %vm160, %v156, 0.0
    %v164 = vsel %vm160, %v157, 0.0
    %v165 = vrot.slane %v148, 7
    %v166 = vrot.slane %v151, 7
    %vm169 = vcmask 1040384
    %v170 = vsel %vm169, 0.0, %v165
    %v171 = vsel %vm169, 0.0, %v166
    %v172 = vsel %vm169, %v165, 0.0
    %v173 = vsel %vm169, %v166, 0.0
    %178 = vrot.lane.b32.xlu0 %v170, 32
    %v179 = vpop.permute.xlu0 %178
    %180 = vrot.lane.b32.xlu0 %v172, 32
    %v181 = vpop.permute.xlu0 %180
    %182 = vrot.lane.b32.xlu0 %v171, 32
    %v183 = vpop.permute.xlu0 %182
    %184 = vrot.lane.b32.xlu0 %v173, 32
    %v185 = vpop.permute.xlu0 %184
    %191 = vrot.lane.b32.xlu0 %v148, 64
    %v192 = vpop.permute.xlu0 %191
    %193 = vrot.lane.b32.xlu0 0.0, 64
    %v194 = vpop.permute.xlu0 %193
    %195 = vrot.lane.b32.xlu0 %v151, 64
    %v196 = vpop.permute.xlu0 %195
    %vm200 = vcmask 261120
    %v201 = vsel %vm200, %v161, %v179
    %v202 = vsel %vm200, %v163, %v181
    %v203 = vsel %vm200, %v162, %v183
    %v204 = vsel %vm200, %v164, %v185
    %v205 = vsel %vm109, %v201, %v192
    %v206 = vsel %vm109, %v202, %v194
    %v207 = vsel %vm109, %v203, %v196
    %v208 = vsel %vm109, %v204, %v194
    %vm209 = vcmask 785408
    %v210 = vsel %vm209, %v205, 0.0
    %v211 = vsel %vm209, %v206, 0.0
    %v212 = vsel %vm209, %v207, 0.0
    %v213 = vsel %vm209, %v208, 0.0
    %v214 = vpack.c.bf16 %v211, %v210
    %v215 = vpack.c.bf16 %v213, %v212
    %v216 = vld [vmem:[%s2] sm:$0xf]
    %v217 = vld [vmem:[%s2 + $0x4] sm:$0xf]
    %v218 = vld [vmem:[%s2 + $0x8] sm:$0xf]
    %v219 = vld [vmem:[%s2 + $0xc] sm:$0xf]
    %v220 = vld [vmem:[%s2 + $0x10] sm:$0xf]
    %v221 = vld [vmem:[%s2 + $0x14] sm:$0xf]
    %v222 = vld [vmem:[%s2 + $0x18] sm:$0xf]
    %v223 = vld [vmem:[%s2 + $0x1c] sm:$0xf]
    %v224 = vld [vmem:[%s2 + $0x20] sm:$0xf]
    %v225 = vld [vmem:[%s2 + $0x24] sm:$0xf]
    %v226 = vld [vmem:[%s2 + $0x28] sm:$0xf]
    %v227 = vld [vmem:[%s2 + $0x2c] sm:$0xf]
    %v228 = vld [vmem:[%s2 + $0x30] sm:$0xf]
    %v229 = vld [vmem:[%s2 + $0x34] sm:$0xf]
    %v230 = vld [vmem:[%s2 + $0x38] sm:$0xf]
    %v231 = vld [vmem:[%s2 + $0x3c] sm:$0xf]
    %v248 = vunpack.c.l.b16 %v216
    %v249 = vunpack.c.l.b16 %v217
    %v250 = vunpack.c.l.b16 %v218
    %v251 = vunpack.c.l.b16 %v219
    %v252 = vunpack.c.l.b16 %v220
    %v253 = vunpack.c.l.b16 %v221
    %v254 = vunpack.c.l.b16 %v222
    %v255 = vunpack.c.l.b16 %v223
    %v256 = vunpack.c.l.b16 %v224
    %v257 = vunpack.c.l.b16 %v225
    %v258 = vunpack.c.l.b16 %v226
    %v259 = vunpack.c.l.b16 %v227
    %v260 = vunpack.c.l.b16 %v228
    %v261 = vunpack.c.l.b16 %v229
    %v262 = vunpack.c.l.b16 %v230
    %v263 = vunpack.c.l.b16 %v231
    %v264 = vpack.c.b16 %v249, %v248
    %v265 = vpack.c.b16 %v251, %v250
    %v266 = vpack.c.b16 %v253, %v252
    %v267 = vpack.c.b16 %v255, %v254
    %v268 = vpack.c.b16 %v257, %v256
    %v269 = vpack.c.b16 %v259, %v258
    %v270 = vpack.c.b16 %v261, %v260
    %v271 = vpack.c.b16 %v263, %v262
    %280 = vmatprep.subr.bf16.mxu0 0
    %281 = vmatpush1.bf16.msra.mxu0 %v264
    %282 = vmatprep.subr.bf16.mxu0 0
    %283 = vmatpush1.bf16.msra.mxu0 %v265
    %284 = vmatprep.subr.bf16.mxu0 0
    %285 = vmatpush1.bf16.msra.mxu0 %v266
    %286 = vmatprep.subr.bf16.mxu0 0
    %287 = vmatpush1.bf16.msra.mxu0 %v267
    %288 = vmatprep.subr.bf16.mxu0 0
    %289 = vmatpush1.bf16.msra.mxu0 %v268
    %290 = vmatprep.subr.bf16.mxu0 0
    %291 = vmatpush1.bf16.msra.mxu0 %v269
    %292 = vmatprep.subr.bf16.mxu0 0
    %293 = vmatpush1.bf16.msra.mxu0 %v270
    %294 = vmatprep.subr.bf16.mxu0 0
    %295 = vmatpush1.bf16.msra.mxu0 %v271
    %296 = vmatprep.subr.bf16.mxu0 0
    %297 = vmatpush1.bf16.msra.mxu0 0
    %298 = vmatprep.subr.bf16.mxu0 0
    %299 = vmatpush1.bf16.msra.mxu0 0
    %300 = vmatprep.subr.bf16.mxu0 0
    %301 = vmatpush1.bf16.msra.mxu0 0
    %302 = vmatprep.subr.bf16.mxu0 0
    %303 = vmatpush1.bf16.msra.mxu0 0
    %304 = vmatprep.subr.bf16.mxu0 0
    %305 = vmatpush1.bf16.msra.mxu0 0
    %306 = vmatprep.subr.bf16.mxu0 0
    %307 = vmatpush1.bf16.msra.mxu0 0
    %308 = vmatprep.subr.bf16.mxu0 0
    %309 = vmatpush1.bf16.msra.mxu0 0
    %310 = vmatprep.subr.bf16.mxu0 0
    %311 = vmatpush1.bf16.msra.mxu0 0
    %312 = vmatprep.mubr.bf16.mxu0 0
    %313 = vmatmul.mubr.bf16.gmra.mrb[0].mxu0 %v214
    %v314 = vpop.f32.mrb[0].mxu0
    %v315 = vadd.f32 0.0, %v314
    %v316 = vpop.f32.mrb[0].mxu0
    %v317 = vpop.f32.mrb[0].mxu0
    %v318 = vadd.f32 0.0, %v317
    %v319 = vpop.f32.mrb[0].mxu0
    %320 = vmatprep.mubr.bf16.mxu0 0
    %321 = vmatmul.mubr.bf16.gmra.mrb[0].mxu0 %v215
    %v322 = vpop.f32.mrb[0].mxu0
    %v323 = vadd.f32 0.0, %v322
    %v324 = vpop.f32.mrb[0].mxu0
    %v325 = vpop.f32.mrb[0].mxu0
    %v326 = vadd.f32 0.0, %v325
    %v327 = vpop.f32.mrb[0].mxu0
    %328 = vdwg.mxu0
    %v329 = vld [vmem:[%s3] sm:$0x1]
    %v331 = vlaneseq
    %v332 = vshrl.u32 %v331, 7
    %v333 = vsub.s32 0, %v332
    %v334 = vrot.slane %v329, %v333
    %v336 = vadd.f32 %v315, %v334
    %v337 = vadd.f32 %v318, %v334
    %v338 = vadd.f32 %v323, %v334
    %v339 = vadd.f32 %v326, %v334
    %v340 = vmax.f32 %v336, 0.0
    %v341 = vmax.f32 %v337, 0.0
    %v342 = vmax.f32 %v338, 0.0
    %v343 = vmax.f32 %v339, 0.0
    %v344 = vld [vmem:[%s4] sm:$0xff]
    %v345 = vld [vmem:[%s4 + $0x8] sm:$0xff]
    %v346 = vmul.f32 %v340, %v344
    %v347 = vmul.f32 %v341, %v345
    %v348 = vmul.f32 %v342, %v344
    %v349 = vmul.f32 %v343, %v345
    %v350 = vmax.f32 %v346, %v347
    %v351 = vrot.slane %v350, 4
    %v352 = vmax.f32 %v350, %v351
    %v353 = vrot.slane %v352, 2
    %v354 = vmax.f32 %v352, %v353
    %v355 = vrot.slane %v354, 1
    %v356 = vmax.f32 %v354, %v355
    %v357 = vmax.f32 %v348, %v349
    %v358 = vrot.slane %v357, 4
    %v359 = vmax.f32 %v357, %v358
    %v360 = vrot.slane %v359, 2
    %v361 = vmax.f32 %v359, %v360
    %v362 = vrot.slane %v361, 1
    %v363 = vmax.f32 %v361, %v362
    %v364 = vpack.c.bf16 %v356, %v356
    %v365 = vpack.c.bf16 %v363, %v363
    %v366 = vld [vmem:[#allocation2] sm:$0xf]
    %v367 = vld [vmem:[#allocation2 + $0x4] sm:$0xf]
    %v368 = vld [vmem:[#allocation2 + $0x8] sm:$0xf]
    %v369 = vld [vmem:[#allocation2 + $0xc] sm:$0xf]
    %v370 = vld [vmem:[#allocation2 + $0x10] sm:$0xf]
    %v371 = vld [vmem:[#allocation2 + $0x14] sm:$0xf]
    %v372 = vld [vmem:[#allocation2 + $0x18] sm:$0xf]
    %v373 = vld [vmem:[#allocation2 + $0x1c] sm:$0xf]
    %v374 = vld [vmem:[#allocation2 + $0x20] sm:$0xf]
    %v375 = vld [vmem:[#allocation2 + $0x24] sm:$0xf]
    %v376 = vld [vmem:[#allocation2 + $0x28] sm:$0xf]
    %v377 = vld [vmem:[#allocation2 + $0x2c] sm:$0xf]
    %v378 = vld [vmem:[#allocation2 + $0x30] sm:$0xf]
    %v379 = vld [vmem:[#allocation2 + $0x34] sm:$0xf]
    %v380 = vld [vmem:[#allocation2 + $0x38] sm:$0xf]
    %v381 = vld [vmem:[#allocation2 + $0x3c] sm:$0xf]
    %v382 = vld [vmem:[%s6] sm:$0x1]
    %v384 = vlaneseq
    %v385 = vshrl.u32 %v384, 7
    %v386 = vsub.s32 0, %v385
    %v387 = vrot.slane %v382, %v386
    %v391 = vunpack.c.l.b16 %v364
    %v392 = vunpack.c.l.b16 %v365
    %vm393 = vcmask 1041409
    %v394 = vsel %vm393, %v392, %v391
    %v395 = vpack.c.b16 %v394, %v394
    %v413 = vunpack.c.l.b16 %v366
    %v414 = vunpack.c.l.b16 %v367
    %v415 = vunpack.c.l.b16 %v368
    %v416 = vunpack.c.l.b16 %v369
    %v417 = vunpack.c.l.b16 %v370
    %v418 = vunpack.c.l.b16 %v371
    %v419 = vunpack.c.l.b16 %v372
    %v420 = vunpack.c.l.b16 %v373
    %v421 = vunpack.c.l.b16 %v374
    %v422 = vunpack.c.l.b16 %v375
    %v423 = vunpack.c.l.b16 %v376
    %v424 = vunpack.c.l.b16 %v377
    %v425 = vunpack.c.l.b16 %v378
    %v426 = vunpack.c.l.b16 %v379
    %v427 = vunpack.c.l.b16 %v380
    %v428 = vunpack.c.l.b16 %v381
    %v429 = vpack.c.b16 %v414, %v413
    %v430 = vpack.c.b16 %v416, %v415
    %v431 = vpack.c.b16 %v418, %v417
    %v432 = vpack.c.b16 %v420, %v419
    %v433 = vpack.c.b16 %v422, %v421
    %v434 = vpack.c.b16 %v424, %v423
    %v435 = vpack.c.b16 %v426, %v425
    %v436 = vpack.c.b16 %v428, %v427
    %445 = vmatprep.subr.bf16.mxu0 0
    %446 = vmatpush1.bf16.msra.mxu0 %v429
    %447 = vmatprep.subr.bf16.mxu0 0
    %448 = vmatpush1.bf16.msra.mxu0 %v430
    %449 = vmatprep.subr.bf16.mxu0 0
    %450 = vmatpush1.bf16.msra.mxu0 %v431
    %451 = vmatprep.subr.bf16.mxu0 0
    %452 = vmatpush1.bf16.msra.mxu0 %v432
    %453 = vmatprep.subr.bf16.mxu0 0
    %454 = vmatpush1.bf16.msra.mxu0 %v433
    %455 = vmatprep.subr.bf16.mxu0 0
    %456 = vmatpush1.bf16.msra.mxu0 %v434
    %457 = vmatprep.subr.bf16.mxu0 0
    %458 = vmatpush1.bf16.msra.mxu0 %v435
    %459 = vmatprep.subr.bf16.mxu0 0
    %460 = vmatpush1.bf16.msra.mxu0 %v436
    %461 = vmatprep.subr.bf16.mxu0 0
    %462 = vmatpush1.bf16.msra.mxu0 0
    %463 = vmatprep.subr.bf16.mxu0 0
    %464 = vmatpush1.bf16.msra.mxu0 0
    %465 = vmatprep.subr.bf16.mxu0 0
    %466 = vmatpush1.bf16.msra.mxu0 0
    %467 = vmatprep.subr.bf16.mxu0 0
    %468 = vmatpush1.bf16.msra.mxu0 0
    %469 = vmatprep.subr.bf16.mxu0 0
    %470 = vmatpush1.bf16.msra.mxu0 0
    %471 = vmatprep.subr.bf16.mxu0 0
    %472 = vmatpush1.bf16.msra.mxu0 0
    %473 = vmatprep.subr.bf16.mxu0 0
    %474 = vmatpush1.bf16.msra.mxu0 0
    %475 = vmatprep.subr.bf16.mxu0 0
    %476 = vmatpush1.bf16.msra.mxu0 0
    %477 = vmatprep.mubr.bf16.mxu0 0
    %478 = vmatmul.mubr.bf16.gmra.mrb[0].mxu0 %v395
    %v479 = vpop.f32.mrb[0].mxu0
    %v480 = vadd.f32 %v387, %v479
    %v481 = vpop.f32.mrb[0].mxu0
    %v482 = vpop.f32.mrb[0].mxu0
    %v483 = vpop.f32.mrb[0].mxu0
    %484 = vdwg.mxu0
    %v485 = vmax.f32 %v480, 0.0
    %v486 = vpack.c.bf16 %v485, %v485
    %v487 = vld [vmem:[#allocation5] sm:$0xf]
    %v488 = vld [vmem:[#allocation5 + $0x4] sm:$0xf]
    %v489 = vld [vmem:[#allocation5 + $0x8] sm:$0xf]
    %v490 = vld [vmem:[#allocation5 + $0xc] sm:$0xf]
    %v491 = vld [vmem:[#allocation5 + $0x10] sm:$0xf]
    %v492 = vld [vmem:[#allocation5 + $0x14] sm:$0xf]
    %v493 = vld [vmem:[#allocation5 + $0x18] sm:$0xf]
    %v494 = vld [vmem:[#allocation5 + $0x1c] sm:$0xf]
    %v495 = vld [vmem:[#allocation5 + $0x20] sm:$0xf]
    %v496 = vld [vmem:[#allocation5 + $0x24] sm:$0xf]
    %v497 = vld [vmem:[#allocation5 + $0x28] sm:$0xf]
    %v498 = vld [vmem:[#allocation5 + $0x2c] sm:$0xf]
    %v499 = vld [vmem:[#allocation5 + $0x30] sm:$0xf]
    %v500 = vld [vmem:[#allocation5 + $0x34] sm:$0xf]
    %v501 = vld [vmem:[#allocation5 + $0x38] sm:$0xf]
    %v502 = vld [vmem:[#allocation5 + $0x3c] sm:$0xf]
    %v503 = vld [vmem:[%s8] sm:$0x1]
    %v505 = vlaneseq
    %v506 = vshrl.u32 %v505, 7
    %v507 = vsub.s32 0, %v506
    %v508 = vrot.slane %v503, %v507
    %v526 = vunpack.c.l.b16 %v487
    %v527 = vunpack.c.l.b16 %v488
    %v528 = vunpack.c.l.b16 %v489
    %v529 = vunpack.c.l.b16 %v490
    %v530 = vunpack.c.l.b16 %v491
    %v531 = vunpack.c.l.b16 %v492
    %v532 = vunpack.c.l.b16 %v493
    %v533 = vunpack.c.l.b16 %v494
    %v534 = vunpack.c.l.b16 %v495
    %v535 = vunpack.c.l.b16 %v496
    %v536 = vunpack.c.l.b16 %v497
    %v537 = vunpack.c.l.b16 %v498
    %v538 = vunpack.c.l.b16 %v499
    %v539 = vunpack.c.l.b16 %v500
    %v540 = vunpack.c.l.b16 %v501
    %v541 = vunpack.c.l.b16 %v502
    %v542 = vpack.c.b16 %v527, %v526
    %v543 = vpack.c.b16 %v529, %v528
    %v544 = vpack.c.b16 %v531, %v530
    %v545 = vpack.c.b16 %v533, %v532
    %v546 = vpack.c.b16 %v535, %v534
    %v547 = vpack.c.b16 %v537, %v536
    %v548 = vpack.c.b16 %v539, %v538
    %v549 = vpack.c.b16 %v541, %v540
    %558 = vmatprep.subr.bf16.mxu0 0
    %559 = vmatpush1.bf16.msra.mxu0 %v542
    %560 = vmatprep.subr.bf16.mxu0 0
    %561 = vmatpush1.bf16.msra.mxu0 %v543
    %562 = vmatprep.subr.bf16.mxu0 0
    %563 = vmatpush1.bf16.msra.mxu0 %v544
    %564 = vmatprep.subr.bf16.mxu0 0
    %565 = vmatpush1.bf16.msra.mxu0 %v545
    %566 = vmatprep.subr.bf16.mxu0 0
    %567 = vmatpush1.bf16.msra.mxu0 %v546
    %568 = vmatprep.subr.bf16.mxu0 0
    %569 = vmatpush1.bf16.msra.mxu0 %v547
    %570 = vmatprep.subr.bf16.mxu0 0
    %571 = vmatpush1.bf16.msra.mxu0 %v548
    %572 = vmatprep.subr.bf16.mxu0 0
    %573 = vmatpush1.bf16.msra.mxu0 %v549
    %574 = vmatprep.subr.bf16.mxu0 0
    %575 = vmatpush1.bf16.msra.mxu0 0
    %576 = vmatprep.subr.bf16.mxu0 0
    %577 = vmatpush1.bf16.msra.mxu0 0
    %578 = vmatprep.subr.bf16.mxu0 0
    %579 = vmatpush1.bf16.msra.mxu0 0
    %580 = vmatprep.subr.bf16.mxu0 0
    %581 = vmatpush1.bf16.msra.mxu0 0
    %582 = vmatprep.subr.bf16.mxu0 0
    %583 = vmatpush1.bf16.msra.mxu0 0
    %584 = vmatprep.subr.bf16.mxu0 0
    %585 = vmatpush1.bf16.msra.mxu0 0
    %586 = vmatprep.subr.bf16.mxu0 0
    %587 = vmatpush1.bf16.msra.mxu0 0
    %588 = vmatprep.subr.bf16.mxu0 0
    %589 = vmatpush1.bf16.msra.mxu0 0
    %590 = vmatprep.mubr.bf16.mxu0 0
    %591 = vmatmul.mubr.bf16.gmra.mrb[0].mxu0 %v486
    %v592 = vpop.f32.mrb[0].mxu0
    %v593 = vadd.f32 %v508, %v592
    %v594 = vpop.f32.mrb[0].mxu0
    %v595 = vpop.f32.mrb[0].mxu0
    %v596 = vpop.f32.mrb[0].mxu0
    %597 = vdwg.mxu0
    %598 = vst [vmem:[#allocation7] sm:$0x3] %v593
    // Predicated region
    $region46: #{tpu_custom_call.1} parent=1 // pred_check
      _
    $region47: #{tpu_custom_call.1} parent=1 // pred_check_branch
      %600 = sbr.rel (0) target = $region49
    $region48: #{tpu_custom_call.1} parent=1 // pred_region
      %s602 = ssub.s32 32, 32
      %603 = vsyncadd [#allocation4], %s602
      %s605 = sshll.u32 [#allocation7], 4
      %s606 = int_to_ptr.vmem [resolvable:$true] %s605
      %608 = dma.vmem_to_hbm [thread:$0]  %s606, 32, %s9, [#allocation4]
    $region49: #{tpu_custom_call.1} parent=1 // pred_fallthru
      _
    // Predicated region
    $region50: #{tpu_custom_call.1} parent=1 // pred_check
      _
    $region51: #{tpu_custom_call.1} parent=1 // pred_check_branch
      %610 = sbr.rel (0) target = $region53
    $region52: #{tpu_custom_call.1} parent=1 // pred_region
      %611 = dma.done [#allocation4], 32
    $region53: #{tpu_custom_call.1} parent=1 // pred_fallthru
      _
    %612 = vsyncpa [#allocation3], 1
    %613 = vsyncpa [#allocation6], 1
    %614 = vsyncpa [#allocation4], 1

</llo_original>
